<compile_context>
chip_gen: v7x
topology: tpu7x:2x2x1
jax: 0.10.0
libtpu: 0.0.40
codegen_flags: <defaults>
</compile_context>

<pallas_src>
import jax
import jax.numpy as jnp
from jax import lax
from jax.experimental import pallas as pl
from jax.experimental.pallas import tpu as pltpu

ROW_CHUNK = 256                            # sublane chunk for the tiled reduction
TB_HARD_MAX = 8192                         # never exceed 8192 batch rows per tile
VMEM_TILE_BUDGET = 12 * 1024 * 1024        # per-step working-set cap (v7x-safe)
RESIDENT_TABLE_BUDGET = 4 * 1024 * 1024    # tables kept VMEM-resident if <= 4 MiB
RESIDENT_MAX_BATCH = 4096                  # per-row in-kernel gather only for modest B


# ----------------------------------------------------------------------------
# Path A kernel: tables resident in VMEM, indices in SMEM, fused gather + dot.
# ----------------------------------------------------------------------------
def _cf_resident_kernel(uidx_ref, iidx_ref, ut_ref, it_ref, o_ref):
    tile = pl.program_id(0)
    tb = o_ref.shape[0]
    batch = uidx_ref.shape[0]
    nu = ut_ref.shape[0]
    ni = it_ref.shape[0]

    def body(b, carry):
        # The last batch tile may be padded past `batch`; clamped rows recompute the
        # last valid element and are discarded on writeback.  The index clamp also
        # matches jnp.take's clip semantics for out-of-range indices.
        gb = jnp.minimum(tile * tb + b, batch - 1)
        u = jnp.clip(uidx_ref[gb], 0, nu - 1)
        i = jnp.clip(iidx_ref[gb], 0, ni - 1)
        urow = ut_ref[pl.ds(u, 1), :].astype(jnp.float32)   # (1, F)
        irow = it_ref[pl.ds(i, 1), :].astype(jnp.float32)   # (1, F)
        o_ref[pl.ds(b, 1), :] = jnp.sum(urow * irow, axis=-1, keepdims=True)
        return carry

    lax.fori_loop(0, tb, body, 0)


# ----------------------------------------------------------------------------
# Path B kernel: row-wise dot of two pre-gathered (TB, F) tiles -> (TB, 1).
# ----------------------------------------------------------------------------
def _cf_dot_kernel(u_ref, v_ref, o_ref):
    tb, _ = u_ref.shape

    def _rows(r, n):
        u = u_ref[pl.ds(r, n), :].astype(jnp.float32)
        v = v_ref[pl.ds(r, n), :].astype(jnp.float32)
        o_ref[pl.ds(r, n), :] = jnp.sum(u * v, axis=-1, keepdims=True).astype(o_ref.dtype)

    if tb > ROW_CHUNK and tb % ROW_CHUNK == 0:
        # Bound vreg live ranges: only one ROW_CHUNK x F slab of u, v is live at a time.
        def body(c, carry):
            _rows(pl.multiple_of(c * ROW_CHUNK, ROW_CHUNK), ROW_CHUNK)
            return carry

        lax.fori_loop(0, tb // ROW_CHUNK, body, 0)
    else:
        _rows(0, tb)


# ----------------------------------------------------------------------------
# Wrappers
# ----------------------------------------------------------------------------
def _round_up(x, m):
    return ((x + m - 1) // m) * m


def _pick_batch_tile(batch, factors, itemsize):
    if batch <= 2 * ROW_CHUNK:
        return batch                       # single full-array block (legal for any B)
    cap = VMEM_TILE_BUDGET // (2 * 2 * factors * itemsize)   # 2 inputs x 2 pipeline buffers
    cap = max(ROW_CHUNK, (cap // ROW_CHUNK) * ROW_CHUNK)
    cap = min(cap, TB_HARD_MAX)
    # Guarantee >= 2 tiles so both v7x TensorCores get a share of the batch axis.
    half = _round_up(pl.cdiv(batch, 2), ROW_CHUNK)
    return min(cap, half)


def _cf_forward_resident(user_idx, item_idx, user_factors, item_factors):
    nu, f = user_factors.shape
    ni, _ = item_factors.shape
    batch = user_idx.shape[0]
    itemsize = jnp.dtype(user_factors.dtype).itemsize

    tb = batch if batch <= 1024 else 1024
    grid = (pl.cdiv(batch, tb),)

    table_bytes = (nu + ni) * f * itemsize
    vmem_needed = 2 * table_bytes + 2 * tb * 4
    vmem_limit = int(min(max(2 * vmem_needed, 16 << 20), 32 << 20))

    out = pl.pallas_call(
        _cf_resident_kernel,
        out_shape=jax.ShapeDtypeStruct((batch, 1), jnp.float32),
        grid_spec=pltpu.PrefetchScalarGridSpec(
            num_scalar_prefetch=2,
            grid=grid,
            in_specs=[
                pl.BlockSpec((nu, f), lambda t, u, i: (0, 0)),   # whole table, resident
                pl.BlockSpec((ni, f), lambda t, u, i: (0, 0)),
            ],
            out_specs=pl.BlockSpec((tb, 1), lambda t, u, i: (t, 0)),
        ),
        compiler_params=pltpu.CompilerParams(
            dimension_semantics=("parallel",),
            vmem_limit_bytes=vmem_limit,
        ),
        cost_estimate=pl.CostEstimate(
            flops=2 * batch * f,
            transcendentals=0,
            bytes_accessed=table_bytes + 3 * batch * 4,
        ),
    )(user_idx.astype(jnp.int32), item_idx.astype(jnp.int32),
      user_factors, item_factors)
    return out[:, 0]


def _cf_forward_gathered(u_gathered, v_gathered):
    batch, f = u_gathered.shape
    itemsize = jnp.dtype(u_gathered.dtype).itemsize
    tb = _pick_batch_tile(batch, f, itemsize)
    grid = (pl.cdiv(batch, tb),)

    vmem_needed = 2 * 2 * tb * f * itemsize + 2 * tb * 4
    vmem_limit = int(min(max(2 * vmem_needed, 16 << 20), 32 << 20))

    out = pl.pallas_call(
        _cf_dot_kernel,
        out_shape=jax.ShapeDtypeStruct((batch, 1), jnp.float32),
        grid_spec=pltpu.PrefetchScalarGridSpec(
            num_scalar_prefetch=0,
            grid=grid,
            in_specs=[
                pl.BlockSpec((tb, f), lambda i: (i, 0)),
                pl.BlockSpec((tb, f), lambda i: (i, 0)),
            ],
            out_specs=pl.BlockSpec((tb, 1), lambda i: (i, 0)),
        ),
        compiler_params=pltpu.CompilerParams(
            dimension_semantics=("parallel",),
            vmem_limit_bytes=vmem_limit,
        ),
        cost_estimate=pl.CostEstimate(
            flops=2 * batch * f,
            transcendentals=0,
            bytes_accessed=2 * batch * f * itemsize + batch * 4,
        ),
    )(u_gathered, v_gathered)
    return out[:, 0]


def cf_forward(user_idx, item_idx, user_factors, item_factors):
    nu, f = user_factors.shape
    ni, _ = item_factors.shape
    batch = user_idx.shape[0]
    itemsize = jnp.dtype(user_factors.dtype).itemsize
    table_bytes = (nu + ni) * f * itemsize

    if table_bytes <= RESIDENT_TABLE_BUDGET and batch <= RESIDENT_MAX_BATCH:
        return _cf_forward_resident(user_idx, item_idx, user_factors, item_factors)

    # TODO(synk): fused per-row DMA gather for large tables is not implemented
    # (descriptor-bound at F*4 bytes/row); fall back to the XLA gather, but with no
    # explicit transpose so the kernel consumes the (B, F) layout directly.
    u_g = jnp.take(user_factors, user_idx, axis=0)   # (B, F)
    v_g = jnp.take(item_factors, item_idx, axis=0)   # (B, F)
    return _cf_forward_gathered(u_g, v_g)


if __name__ == "__main__":
    num_users, num_items, num_factors = 16, 32, 32
    batch = 8

    key = jax.random.PRNGKey(0)
    k1, k2, k3, k4, k5, k6 = jax.random.split(key, 6)
    # nn.Embedding default init is N(0, 1); initialize deterministically here.
    user_factors = jax.random.normal(k1, (num_users, num_factors), dtype=jnp.float32)
    item_factors = jax.random.normal(k2, (num_items, num_factors), dtype=jnp.float32)
    user = jax.random.randint(k3, (batch,), 0, num_users, dtype=jnp.int32)
    item = jax.random.randint(k4, (batch,), 0, num_items, dtype=jnp.int32)

    # Path A: fused in-kernel gather (small tables -> VMEM-resident).
    out = jax.block_until_ready(cf_forward(user, item, user_factors, item_factors))
    ref = jnp.sum(user_factors[user] * item_factors[item], axis=1)
    assert out.shape == (batch,)
    assert jnp.allclose(out, ref, atol=1e-5, rtol=1e-5)

    # Path B: pre-gathered tiles (exercises the chunked, multi-tile kernel with a
    # partial last block) — still small shapes.
    big_b = 640
    user_b = jax.random.randint(k5, (big_b,), 0, num_users, dtype=jnp.int32)
    item_b = jax.random.randint(k6, (big_b,), 0, num_items, dtype=jnp.int32)
    u_g = jnp.take(user_factors, user_b, axis=0)
    v_g = jnp.take(item_factors, item_b, axis=0)
    out_b = jax.block_until_ready(_cf_forward_gathered(u_g, v_g))
    ref_b = jnp.sum(u_g * v_g, axis=1)
    assert out_b.shape == (big_b,)
    assert jnp.allclose(out_b, ref_b, atol=1e-5, rtol=1e-5)

    print("KERNEL_OK")
</pallas_src>

<mosaic_0001>
module attributes {stable_mosaic.version = 11 : i64} {
  func.func @_cf_resident_kernel(%arg0: i32, %arg1: memref<8xi32, #tpu.memory_space<smem>>, %arg2: memref<8xi32, #tpu.memory_space<smem>>, %arg3: memref<16x32xf32, #tpu.memory_space<vmem>>, %arg4: memref<32x32xf32, #tpu.memory_space<vmem>>, %arg5: memref<8x1xf32, #tpu.memory_space<vmem>>) attributes {dimension_semantics = [#tpu.dimension_semantics<parallel>], iteration_bounds = array<i64: 1>, scalar_prefetch = 2 : i64, scratch_operands = 0 : i64, tpu.core_type = #tpu.core_type<tc>, window_params = [{pipeline_mode = #tpu.pipeline_mode<synchronous>, transform_indices = @transform_0, window_bounds = array<i64: 16, 32>}, {pipeline_mode = #tpu.pipeline_mode<synchronous>, transform_indices = @transform_1, window_bounds = array<i64: 32, 32>}, {transform_indices = @transform_2, window_bounds = array<i64: 8, 1>}]} {
    %c0_i32 = arith.constant 0 : i32
    %c8_i32 = arith.constant 8 : i32
    %0 = arith.addi %c0_i32, %c8_i32 : i32
    %c1_i32 = arith.constant 1 : i32
    scf.for %arg6 = %c0_i32 to %0 step %c1_i32  : i32 {
      %c8_i32_1 = arith.constant 8 : i32
      %1 = arith.muli %arg0, %c8_i32_1 : i32
      %2 = arith.addi %1, %arg6 : i32
      %c7_i32 = arith.constant 7 : i32
      %3 = arith.minsi %2, %c7_i32 : i32
      %4 = arith.index_cast %3 : i32 to index
      %5 = memref.load %arg1[%4] : memref<8xi32, #tpu.memory_space<smem>>
      %c0_i32_2 = arith.constant 0 : i32
      %c15_i32 = arith.constant 15 : i32
      %6 = arith.maxsi %c0_i32_2, %5 : i32
      %7 = arith.minsi %c15_i32, %6 : i32
      %8 = arith.index_cast %3 : i32 to index
      %9 = memref.load %arg2[%8] : memref<8xi32, #tpu.memory_space<smem>>
      %c0_i32_3 = arith.constant 0 : i32
      %c31_i32 = arith.constant 31 : i32
      %10 = arith.maxsi %c0_i32_3, %9 : i32
      %11 = arith.minsi %c31_i32, %10 : i32
      %12 = arith.index_cast %7 : i32 to index
      %c0 = arith.constant 0 : index
      %13 = vector.load %arg3[%12, %c0] : memref<16x32xf32, #tpu.memory_space<vmem>>, vector<1x32xf32>
      %14 = arith.index_cast %11 : i32 to index
      %c0_4 = arith.constant 0 : index
      %15 = vector.load %arg4[%14, %c0_4] : memref<32x32xf32, #tpu.memory_space<vmem>>, vector<1x32xf32>
      %16 = arith.mulf %13, %15 : vector<1x32xf32>
      %cst = arith.constant dense<0.000000e+00> : vector<1xf32>
      %17 = vector.multi_reduction <add>, %16, %cst [1] : vector<1x32xf32> to vector<1xf32>
      %18 = vector.shape_cast %17 : vector<1xf32> to vector<1x1xf32>
      %19 = arith.index_cast %arg6 : i32 to index
      %c0_5 = arith.constant 0 : index
      %20 = vector.load %arg5[%19, %c0_5] : memref<8x1xf32, #tpu.memory_space<vmem>>, vector<1x1xf32>
      tpu.vector_store %arg5[%19, %c0_5], %18 {strides = array<i32>} : memref<8x1xf32, #tpu.memory_space<vmem>>, vector<1x1xf32>,
    }
    %c8_i32_0 = arith.constant 8 : i32
    return
  }
  func.func @transform_0(%arg0: i32, %arg1: memref<8xi32, #tpu.memory_space<smem>>, %arg2: memref<8xi32, #tpu.memory_space<smem>>) -> (i32, i32) {
    %c0_i32 = arith.constant 0 : i32
    %c0_i32_0 = arith.constant 0 : i32
    %c0_i32_1 = arith.constant 0 : i32
    return %c0_i32, %c0_i32_0 : i32, i32
  }
  func.func @transform_1(%arg0: i32, %arg1: memref<8xi32, #tpu.memory_space<smem>>, %arg2: memref<8xi32, #tpu.memory_space<smem>>) -> (i32, i32) {
    %c0_i32 = arith.constant 0 : i32
    %c0_i32_0 = arith.constant 0 : i32
    %c0_i32_1 = arith.constant 0 : i32
    return %c0_i32, %c0_i32_0 : i32, i32
  }
  func.func @transform_2(%arg0: i32, %arg1: memref<8xi32, #tpu.memory_space<smem>>, %arg2: memref<8xi32, #tpu.memory_space<smem>>) -> (i32, i32) {
    %c0_i32 = arith.constant 0 : i32
    %c0_i32_0 = arith.constant 0 : i32
    return %arg0, %c0_i32 : i32, i32
  }
}

</mosaic_0001>

<llo_original>
// kernel: tpu_custom_call.1
$region0: #{tpu_custom_call.1}
  #allocation0 [shape = 'u32[]', space=smem, size = 0x4, offset = 0x4, fixed_abs, tag = 'smem constant byte address 0x4 - core index']
  #allocation1 [shape = 'u32[144,128]{1,0:T(1,128)}', space=vmem, size = 0x12000, scoped, tag = 'internal scratch']
  #allocation2 [shape = 's32[1]{0}', space=sflag, size = 0x4, scoped, tag = 'scoped memory for tpu_custom_call.1']
  #allocation3 [shape = 'u8[512]{0}', space=smem, size = 0x200, scoped, tag = 'prefetched SMEM operand 0']
  #allocation4 [shape = 'u8[512]{0}', space=smem, size = 0x200, scoped, tag = 'prefetched SMEM operand 1']
  %s0 = inlined_call_operand.hbm [shape: s32[8], index: 0, kind: input, shape index: {}]
  %s1 = inlined_call_operand.vmem [shape: s32[8], index: 1, kind: input, shape index: {}]
  %s2 = inlined_call_operand.hbm [shape: f32[16,32], index: 2, kind: input, shape index: {}]
  %s3 = inlined_call_operand.hbm [shape: f32[32,32], index: 3, kind: input, shape index: {}]
  %s4 = inlined_call_operand.vmem [shape: f32[8,1], index: 4, kind: output, shape index: {}]
  %s5 = sld [smem:[#allocation0]]
  $region33: #{tpu_custom_call.1} parent=0
    _
  %s7 = ssub.s32 1, %s5
  %s8 = scalar_select 0, %s7, %s5
  %10 = dma.hbm_to_smem %s0, 16, [#allocation3], [#allocation2]
  %s11 = sshll.u32 %s1, 4
  %s12 = int_to_ptr.vmem [resolvable:$true] %s11
  %14 = dma.vmem_to_smem %s12, 16, [#allocation4], [#allocation2]
  %15 = dma.done [#allocation2], 32
  %16 = sfence
  $region1: #{tpu_custom_call.1} parent=0
    #allocation5 [shape = 'u8[8192]{0}', space=vmem, size = 0x2000, scoped, tag = 'input window, operand 2, single buffered']
    #allocation6 [shape = 's32[1]{0}', space=sflag, size = 0x4, scoped, tag = 'scoped memory for tpu_custom_call.1']
    #allocation7 [shape = 'u8[16384]{0}', space=vmem, size = 0x4000, scoped, tag = 'input window, operand 3, single buffered']
    #allocation8 [shape = 's32[1]{0}', space=sflag, size = 0x4, scoped, tag = 'scoped memory for tpu_custom_call.1']
    %17 = vsyncpa [#allocation6], 0
    %18 = vsyncpa [#allocation8], 0
    // Predicated region
    $region2: #{tpu_custom_call.1} parent=1 // pred_check
      _
    $region3: #{tpu_custom_call.1} parent=1 // pred_check_branch
      %20 = sbr.rel (0) target = $region5
    $region4: #{tpu_custom_call.1} parent=1 // pred_region
      %s22 = ssub.s32 256, 256
      %23 = vsyncadd [#allocation6], %s22
      %s24 = sshll.u32 [#allocation5], 4
      %s25 = int_to_ptr.vmem [resolvable:$true] %s24
      %30 = dma.hbm_to_vmem [thread:$0]  %s2, 256, %s25, [#allocation6], 128, 128, 8
    $region5: #{tpu_custom_call.1} parent=1 // pred_fallthru
      _
    // Predicated region
    $region6: #{tpu_custom_call.1} parent=1 // pred_check
      _
    $region7: #{tpu_custom_call.1} parent=1 // pred_check_branch
      %32 = sbr.rel (0) target = $region9
    $region8: #{tpu_custom_call.1} parent=1 // pred_region
      %s34 = ssub.s32 512, 512
      %35 = vsyncadd [#allocation8], %s34
      %s36 = sshll.u32 [#allocation7], 4
      %s37 = int_to_ptr.vmem [resolvable:$true] %s36
      %42 = dma.hbm_to_vmem [thread:$0]  %s3, 512, %s37, [#allocation8], 128, 128, 8
    $region9: #{tpu_custom_call.1} parent=1 // pred_fallthru
      _
    // Predicated region
    $region10: #{tpu_custom_call.1} parent=1 // pred_check
      _
    $region11: #{tpu_custom_call.1} parent=1 // pred_check_branch
      %44 = sbr.rel (0) target = $region13
    $region12: #{tpu_custom_call.1} parent=1 // pred_region
      %45 = dma.done [#allocation6], 256
    $region13: #{tpu_custom_call.1} parent=1 // pred_fallthru
      _
    // Predicated region
    $region14: #{tpu_custom_call.1} parent=1 // pred_check
      _
    $region15: #{tpu_custom_call.1} parent=1 // pred_check_branch
      %47 = sbr.rel (0) target = $region17
    $region16: #{tpu_custom_call.1} parent=1 // pred_region
      %48 = dma.done [#allocation8], 512
    $region17: #{tpu_custom_call.1} parent=1 // pred_fallthru
      _
    loop: start=0, step=1, limit=8
    $region18: #{tpu_custom_call.1} parent=1 // loop_pre_header
      _
    $region19: #{tpu_custom_call.1} parent=1 // loop_header
      %s50 = sphi 0, %s54
      %p51 = scmp.ge.s32.totalorder %s50, 8
    $region20: #{tpu_custom_call.1} parent=1 // loop_header_branch
      %53 = sbr.rel (%p51) target = $region24
    $region21: #{tpu_custom_call.1} parent=1 // loop_body
      %s55 = smul.u32 0, 8
      %s56 = sadd.s32 %s55, %s50
      %p57 = scmp.lt.s32.totalorder %s56, 7
      %s58 = scalar_select %p57, %s56, 7
      %s59 = sld [smem:[#allocation3 + %s58]]
      %p60 = scmp.gt.s32.totalorder %s59, 0
      %s61 = scalar_select %p60, %s59, 0
      %p62 = scmp.lt.s32.totalorder %s61, 15
      %s63 = scalar_select %p62, %s61, 15
      %s64 = sld [smem:[#allocation4 + %s58]]
      %p65 = scmp.gt.s32.totalorder %s64, 0
      %s66 = scalar_select %p65, %s64, 0
      %p67 = scmp.lt.s32.totalorder %s66, 31
      %s68 = scalar_select %p67, %s66, 31
      %s69 = scalar_lea.vmem [#allocation5], %s63
      %v70 = vld [vmem:[%s69] sm:$0x1]
      %s71 = scalar_lea.vmem [#allocation7], %s68
      %v72 = vld [vmem:[%s71] sm:$0x1]
      %v73 = vmul.f32 %v70, %v72
      %vm74 = vcmask 253952
      %v75 = vsel %vm74, %v73, 0.0
      %76 = vadd.xlane.f32.xlu0 %v75
      %v77 = vpop.xlane.xlu0 %76
      %s78 = scalar_lea.vmem %s4, %s50
      %vm79 = vcmask 0
      %80 = vst.msk [vmem:[%s78] sm:$0x1] %vm79, %v77
    $region22: #{tpu_custom_call.1} parent=1 // loop_footer
      %s54 = sadd.s32 1, %s50
    $region23: #{tpu_custom_call.1} parent=1 // loop_footer_branch
      %49 = sbr.rel target = $region19
    $region24: #{tpu_custom_call.1} parent=1 // loop_exit
      _
    // Predicated region
    $region25: #{tpu_custom_call.1} parent=1 // pred_check
      _
    $region26: #{tpu_custom_call.1} parent=1 // pred_check_branch
      %82 = sbr.rel (0) target = $region28
    $region27: #{tpu_custom_call.1} parent=1 // pred_region
      _
    $region28: #{tpu_custom_call.1} parent=1 // pred_fallthru
      _
    // Predicated region
    $region29: #{tpu_custom_call.1} parent=1 // pred_check
      _
    $region30: #{tpu_custom_call.1} parent=1 // pred_check_branch
      %84 = sbr.rel (0) target = $region32
    $region31: #{tpu_custom_call.1} parent=1 // pred_region
      _
    $region32: #{tpu_custom_call.1} parent=1 // pred_fallthru
      _
    %85 = vsyncpa [#allocation6], 1
    %86 = vsyncpa [#allocation8], 1

</llo_original>
